<compile_context>
chip_gen: v6e
topology: v6e:2x2x1
jax: 0.10.0
libtpu: 0.0.40
codegen_flags: <defaults>
</compile_context>

<pallas_src>
import jax
import jax.numpy as jnp
from jax.experimental import pallas as pl
from jax.experimental.pallas import tpu as pltpu


# ---------------------------------------------------------------------------
# Kernel 1: weights = softmax(exp(-log_vars))  (M scalars, single invocation)
# ---------------------------------------------------------------------------
def _weights_kernel(lv_ref, w_ref):
    lv = lv_ref[...].astype(jnp.float32)                 # (1, M)
    e = jnp.exp(-lv)                                     # exp(-log_vars)
    m = jnp.max(e, axis=-1, keepdims=True)               # stable softmax
    p = jnp.exp(e - m)
    w_ref[...] = p / jnp.sum(p, axis=-1, keepdims=True)  # (1, M) f32


# ---------------------------------------------------------------------------
# Kernel 2: fused tile = sum_i w[i] * feature_i tile   (VPU FMA, tiled grid)
# ---------------------------------------------------------------------------
def _make_fused_kernel(num_modalities):
    def kernel(*refs):
        w_ref = refs[0]                                  # (1, M) f32, resident
        feat_refs = refs[1:1 + num_modalities]           # M x (TB, TF)
        out_ref = refs[1 + num_modalities]               # (TB, TF)

        w = w_ref[...]                                   # (1, M)
        # M-term FMA with (1,1)->(TB,TF) scalar broadcasts; accumulation is
        # promoted to f32 by the f32 weights (no explicit feature upcast).
        acc = feat_refs[0][...] * w[0:1, 0:1]
        for i in range(1, num_modalities):
            acc = acc + feat_refs[i][...] * w[0:1, i:i + 1]
        out_ref[...] = acc.astype(out_ref.dtype)
    return kernel


def _pick_tile(dim, candidates):
    """Largest candidate tile that divides `dim`; falls back to the full dim
    (a block equal to the full array dim is always legal)."""
    for c in candidates:
        if c <= dim and dim % c == 0:
            return c
    return dim


def uncertainty_weighting(features_list, log_vars):
    """features_list: list of M same-shape arrays; log_vars: (M,) parameter.

    Returns (fused, weights), matching UncertaintyWeighting.forward.
    """
    M = len(features_list)
    feat_shape = features_list[0].shape
    dtype = features_list[0].dtype

    # ---- weights: tiny dedicated Pallas kernel (runs once) ----
    lv2d = jnp.asarray(log_vars, jnp.float32).reshape(1, M)
    weights2d = pl.pallas_call(
        _weights_kernel,
        out_shape=jax.ShapeDtypeStruct((1, M), jnp.float32),
    )(lv2d)
    weights = weights2d.reshape(M)

    # ---- fused sum: tiled, pipelined, megacore-parallel ----
    # Flatten each feature to 2D (rows, lanes); keeps the last dim lane-dense.
    feats2d = [
        f.reshape(1, -1) if f.ndim < 2 else f.reshape(-1, f.shape[-1])
        for f in features_list
    ]
    R, C = feats2d[0].shape
    # Tile sizes: sublane dim multiple of 8, lane dim multiple of 128, capped
    # so the double-buffered working set stays small on v7x/v5e scoped VMEM.
    TB = _pick_tile(R, (256, 128, 64, 32, 16, 8))
    TF = _pick_tile(C, (512, 256, 128))
    grid = (R // TB, C // TF)

    itemsize = jnp.dtype(dtype).itemsize
    cost = pl.CostEstimate(
        flops=2 * M * R * C,
        transcendentals=0,
        bytes_accessed=(M + 1) * R * C * itemsize + 4 * M,
    )

    fused2d = pl.pallas_call(
        _make_fused_kernel(M),
        out_shape=jax.ShapeDtypeStruct((R, C), dtype),
        grid=grid,
        in_specs=(
            # weights: constant block index -> DMA'd once, stays resident.
            [pl.BlockSpec((1, M), lambda i, j: (0, 0))]
            # each modality tiled identically over (rows, lanes).
            + [pl.BlockSpec((TB, TF), lambda i, j: (i, j)) for _ in range(M)]
        ),
        out_specs=pl.BlockSpec((TB, TF), lambda i, j: (i, j)),
        compiler_params=pltpu.CompilerParams(
            dimension_semantics=("parallel", "parallel")),
        cost_estimate=cost,
    )(weights2d, *feats2d)

    return fused2d.reshape(feat_shape), weights


def reference(features_list, log_vars):
    """Pure-JAX reference mirroring the PyTorch forward."""
    w = jax.nn.softmax(jnp.exp(-log_vars))
    fused = sum(f * w[i] for i, f in enumerate(features_list))
    return fused, w


if __name__ == "__main__":
    M = 4              # num_modalities
    B, D = 8, 1024     # each modality feature: (batch, hidden) -> grid (1, 2)

    key = jax.random.PRNGKey(0)
    k_lv, k_f = jax.random.split(key)
    # Parameter (nonzero init so the softmax weights are nontrivial).
    log_vars = jax.random.normal(k_lv, (M,), jnp.float32) * 0.5
    features_list = [
        jax.random.normal(jax.random.fold_in(k_f, i), (B, D), jnp.float32)
        for i in range(M)
    ]

    fused, weights = uncertainty_weighting(features_list, log_vars)
    fused = jax.block_until_ready(fused)
    weights = jax.block_until_ready(weights)

    ref_fused, ref_w = reference(features_list, log_vars)
    assert fused.shape == (B, D) and weights.shape == (M,)
    assert jnp.allclose(weights, ref_w, atol=1e-6, rtol=1e-6), "weights mismatch"
    assert jnp.allclose(fused, ref_fused, atol=1e-5, rtol=1e-5), "fused mismatch"
    print("KERNEL_OK")
</pallas_src>

<mosaic_0001>
module attributes {stable_mosaic.version = 11 : i64} {
  func.func @_weights_kernel(%arg0: memref<1x4xf32, #tpu.memory_space<vmem>>, %arg1: memref<1x4xf32, #tpu.memory_space<vmem>>) attributes {dimension_semantics = [], scalar_prefetch = 0 : i64, scratch_operands = 0 : i64, tpu.core_type = #tpu.core_type<tc>} {
    %c0 = arith.constant 0 : index
    %c0_0 = arith.constant 0 : index
    %0 = vector.load %arg0[%c0, %c0_0] : memref<1x4xf32, #tpu.memory_space<vmem>>, vector<1x4xf32>
    %cst = arith.constant 0.000000e+00 : f32
    %1 = vector.broadcast %cst : f32 to vector<1x4xf32>
    %2 = arith.subf %1, %0 : vector<1x4xf32>
    %3 = math.exp %2 : vector<1x4xf32>
    %cst_1 = arith.constant dense<0xFF800000> : vector<1xf32>
    %4 = vector.multi_reduction <maximumf>, %3, %cst_1 [1] : vector<1x4xf32> to vector<1xf32>
    %5 = vector.shape_cast %4 : vector<1xf32> to vector<1x1xf32>
    %6 = vector.broadcast %5 : vector<1x1xf32> to vector<1x4xf32>
    %7 = arith.subf %3, %6 : vector<1x4xf32>
    %8 = math.exp %7 : vector<1x4xf32>
    %cst_2 = arith.constant dense<0.000000e+00> : vector<1xf32>
    %9 = vector.multi_reduction <add>, %8, %cst_2 [1] : vector<1x4xf32> to vector<1xf32>
    %10 = vector.shape_cast %9 : vector<1xf32> to vector<1x1xf32>
    %11 = vector.broadcast %10 : vector<1x1xf32> to vector<1x4xf32>
    %12 = arith.divf %8, %11 : vector<1x4xf32>
    %c0_3 = arith.constant 0 : index
    %c0_4 = arith.constant 0 : index
    %13 = vector.load %arg1[%c0_3, %c0_4] : memref<1x4xf32, #tpu.memory_space<vmem>>, vector<1x4xf32>
    tpu.vector_store %arg1[%c0_3, %c0_4], %12 {strides = array<i32>} : memref<1x4xf32, #tpu.memory_space<vmem>>, vector<1x4xf32>,
    return
  }
}

</mosaic_0001>

<llo_original>
// kernel: tpu_custom_call.1
$region0: #{tpu_custom_call.1}
  #allocation0 [shape = 'u32[]', space=smem, size = 0x4, offset = 0x4, fixed_abs, tag = 'smem constant byte address 0x4 - core index']
  #allocation1 [shape = 'u32[144,128]{1,0:T(1,128)}', space=vmem, size = 0x12000, scoped, tag = 'internal scratch']
  %s0 = inlined_call_operand.hbm [shape: f32[1,4], index: 0, kind: input, shape index: {}]
  %s1 = inlined_call_operand.hbm [shape: f32[1,4], index: 1, kind: output, shape index: {}]
  %s2 = sld [smem:[#allocation0]]
  $region18: #{tpu_custom_call.1} parent=0
    _
  %s4 = ssub.s32 1, %s2
  %s5 = scalar_select 0, %s4, %s2
  $region1: #{tpu_custom_call.1} parent=0
    #allocation2 [shape = 'u8[512]{0}', space=vmem, size = 0x400, scoped, tag = 'input window, operand 0, single buffered']
    #allocation3 [shape = 's32[1]{0}', space=sflag, size = 0x4, scoped, tag = 'scoped memory for tpu_custom_call.1']
    #allocation4 [shape = 's32[1]{0}', space=sflag, size = 0x4, scoped, tag = 'scoped memory for tpu_custom_call.1']
    #allocation5 [shape = 'u8[512]{0}', space=vmem, size = 0x400, scoped, tag = 'output window, operand 0, single buffered']
    %6 = vsyncpa [#allocation3], 0
    %7 = vsyncpa [#allocation4], 0
    // Predicated region
    $region2: #{tpu_custom_call.1} parent=1 // pred_check
      _
    $region3: #{tpu_custom_call.1} parent=1 // pred_check_branch
      %9 = sbr.rel (0) target = $region5
    $region4: #{tpu_custom_call.1} parent=1 // pred_region
      %s11 = ssub.s32 16, 16
      %12 = vsyncadd [#allocation3], %s11
      %s14 = sshll.u32 [#allocation2], 4
      %s15 = int_to_ptr.vmem [resolvable:$true] %s14
      %17 = dma.hbm_to_vmem [thread:$0]  %s0, 16, %s15, [#allocation3]
    $region5: #{tpu_custom_call.1} parent=1 // pred_fallthru
      _
    // Predicated region
    $region6: #{tpu_custom_call.1} parent=1 // pred_check
      _
    $region7: #{tpu_custom_call.1} parent=1 // pred_check_branch
      %19 = sbr.rel (0) target = $region9
    $region8: #{tpu_custom_call.1} parent=1 // pred_region
      %20 = dma.done [#allocation3], 16
    $region9: #{tpu_custom_call.1} parent=1 // pred_fallthru
      _
    %v21 = vld [vmem:[#allocation2] sm:$0x1]
    %v22 = vsub.f32 0.0, %v21
    %v23 = vmul.f32 %v22, 1.442695
    %v24 = vpow.pop %v23
    %vm25 = vcmask 24576
    %v26 = vsel %vm25, %v24, -inf
    %27 = vmax.xlane.f32.xlu0 %v26
    %v28 = vpop.xlane.xlu0 %27
    %v29 = vsub.f32 %v24, %v28
    %v30 = vmul.f32 %v29, 1.442695
    %v31 = vpow.pop %v30
    %v32 = vsel %vm25, %v31, 0.0
    %33 = vadd.xlane.f32.xlu0 %v32
    %v34 = vpop.xlane.xlu0 %33
    %v35 = vrcp.pop %v34
    %v36 = vmul.f32 %v31, %v35
    %37 = vst.msk [vmem:[#allocation5] sm:$0x1] %vm25, %v36
    // Predicated region
    $region10: #{tpu_custom_call.1} parent=1 // pred_check
      _
    $region11: #{tpu_custom_call.1} parent=1 // pred_check_branch
      %39 = sbr.rel (0) target = $region13
    $region12: #{tpu_custom_call.1} parent=1 // pred_region
      %s41 = ssub.s32 16, 16
      %42 = vsyncadd [#allocation4], %s41
      %s44 = sshll.u32 [#allocation5], 4
      %s45 = int_to_ptr.vmem [resolvable:$true] %s44
      %47 = dma.vmem_to_hbm [thread:$0]  %s45, 16, %s1, [#allocation4]
    $region13: #{tpu_custom_call.1} parent=1 // pred_fallthru
      _
    // Predicated region
    $region14: #{tpu_custom_call.1} parent=1 // pred_check
      _
    $region15: #{tpu_custom_call.1} parent=1 // pred_check_branch
      %49 = sbr.rel (0) target = $region17
    $region16: #{tpu_custom_call.1} parent=1 // pred_region
      %50 = dma.done [#allocation4], 16
    $region17: #{tpu_custom_call.1} parent=1 // pred_fallthru
      _
    %51 = vsyncpa [#allocation3], 1
    %52 = vsyncpa [#allocation4], 1

</llo_original>
